<compile_context>
chip_gen: v6e
topology: v6e:2x2x1
jax: 0.10.0
libtpu: 0.0.40
codegen_flags: <defaults>
</compile_context>

<pallas_src>
import functools

import jax
import jax.numpy as jnp
from jax import lax
from jax.experimental import pallas as pl
from jax.experimental.pallas import tpu as pltpu


# --------------------------------------------------------------------------- #
# Pallas kernel
# --------------------------------------------------------------------------- #
def _dense_dyn_block_kernel(x_all_ref, x_ctr_ref, idx_ref, w1_ref, w2_ref,
                            b_ref, o_ref, *, n, k, tn, c_in, c_out,
                            compute_dtype):
    """One (batch b, node-tile t) grid step.

    x_all_ref : (1, C, N)        full node features (gather source)
    x_ctr_ref : (1, C, TN)       centre features of this node tile
    idx_ref   : (1, 1, 1, K*TN)  neighbour ids; lane m = j*TN + i  -> nbr j of node i
    w1_ref    : (Cout, C)        1x1-conv weight acting on x
    w2_ref    : (Cout, C)        1x1-conv weight acting on aggr
    b_ref     : (Cout, 1)        bias
    o_ref     : (1, C+Cout, TN)  [x ; relu(conv)]  (DenseDynBlock skip fused in)
    """
    x_all = x_all_ref[0]              # (C, N)  float32
    x_ctr = x_ctr_ref[0]              # (C, TN) float32
    idx_flat = idx_ref[0, 0]          # (1, K*TN) int32

    # ---- fused neighbour gather: ONE selection matmul for all K neighbours ----
    # sel[r, j*TN + i] == 1 iff node r is the j-th neighbour of tile node i.
    rows = lax.broadcasted_iota(jnp.int32, (n, k * tn), 0)
    sel = (rows == idx_flat).astype(compute_dtype)                  # (N, K*TN)
    gathered = jnp.dot(x_all.astype(compute_dtype), sel,
                       preferred_element_type=jnp.float32)          # (C, K*TN)

    # max over the K neighbours (log-depth tree over static lane slices), then
    # subtract the centre once:  max_j(x_j) - x == max_j(x_j - x)  (exact).
    parts = [gathered[:, j * tn:(j + 1) * tn] for j in range(k)]
    while len(parts) > 1:
        nxt = [jnp.maximum(parts[i], parts[i + 1])
               for i in range(0, len(parts) - 1, 2)]
        if len(parts) % 2:
            nxt.append(parts[-1])
        parts = nxt
    aggr = parts[0] - x_ctr                                         # (C, TN) f32

    # ---- split-weight 1x1 conv + bias + ReLU (no channel concat) ----
    out = jnp.dot(w1_ref[...], x_ctr.astype(compute_dtype),
                  preferred_element_type=jnp.float32)
    out = out + jnp.dot(w2_ref[...], aggr.astype(compute_dtype),
                        preferred_element_type=jnp.float32)
    out = jnp.maximum(out + b_ref[...], 0.0)                        # (Cout, TN)

    # ---- DenseDynBlock2d: cat([x, dense], channel) fused into the store ----
    o_ref[0, 0:c_in, :] = x_ctr.astype(o_ref.dtype)
    o_ref[0, c_in:c_in + c_out, :] = out.astype(o_ref.dtype)


# --------------------------------------------------------------------------- #
# Wrapper
# --------------------------------------------------------------------------- #
def _choose_tile_n(n: int, k: int) -> int:
    """Node-axis tile TN. Must equal N or be a multiple of 128 (lane tiling);
    bounded so the (N, K*TN) selection slab stays well under v7x's 64 MiB VMEM."""
    if n <= 512 or n % 128 != 0:
        return n
    for tn in (512, 384, 256, 128):
        if n % tn == 0 and n * k * tn * 4 <= 8 * 1024 * 1024:
            return tn
    return 128


def _knn_graph(x_bcn, k):
    """DilatedKNN2d(k, dilation=1, self_loop=True): plain feature-space k-NN.
    Returned indices are guaranteed in [0, N), so the in-kernel one-hot gather
    never sees out-of-range ids."""
    sq = jnp.sum(x_bcn * x_bcn, axis=1)                       # (B, N)
    inner = jnp.einsum('bci,bcj->bij', x_bcn, x_bcn)          # (B, N, N)
    dist = sq[:, :, None] - 2.0 * inner + sq[:, None, :]      # (B, N, N)
    _, nbr = lax.top_k(-dist, k)                              # (B, N, K)
    return nbr.astype(jnp.int32)


def dense_dyn_block2d_pallas(x_nchw, weight, bias, *, k=9,
                             compute_dtype=jnp.float32):
    """DenseDynBlock2d(conv='mr', act='relu', norm=None) forward.

    x_nchw : (B, C, N, 1) float32
    weight : (Cout, 2C)   squeezed 1x1 Conv2d weight of MLP2dLayer
    bias   : (Cout,)
    Returns cat([x, gconv(x)], channel): (B, C+Cout, N, 1) float32.

    compute_dtype=jnp.bfloat16 runs the MXU matmuls in bf16 with f32 accumulate
    (one-hot selection matrix is exact in bf16); ~2x MXU throughput on v5e.
    """
    B, C, N, _ = x_nchw.shape
    Cout = weight.shape[0]
    assert weight.shape == (Cout, 2 * C)

    # Channels-first, N on lanes: just a squeeze, no transpose.
    x_bcn = x_nchw[..., 0].astype(jnp.float32)                # (B, C, N)
    nbr = _knn_graph(x_bcn, k)                                # (B, N, K)

    tn = _choose_tile_n(N, k)
    assert N % tn == 0
    nt = N // tn

    # Neighbour ids flattened per node tile so the kernel builds its selection
    # matrix with a single sublane-broadcast compare (no in-kernel reshape):
    #   idx_flat[b, t, 0, j*TN + i] = nbr[b, t*TN + i, j]
    idx_flat = (nbr.transpose(0, 2, 1)                        # (B, K, N)
                   .reshape(B, k, nt, tn)
                   .transpose(0, 2, 1, 3)
                   .reshape(B, nt, 1, k * tn)).astype(jnp.int32)

    # Split 1x1-conv weight:  cat([x, aggr]) @ W.T == W1 @ x + W2 @ aggr
    w1 = weight[:, :C].astype(compute_dtype)                  # (Cout, C)
    w2 = weight[:, C:].astype(compute_dtype)                  # (Cout, C)
    b2 = bias.reshape(Cout, 1).astype(jnp.float32)

    kernel = functools.partial(_dense_dyn_block_kernel, n=N, k=k, tn=tn,
                               c_in=C, c_out=Cout, compute_dtype=compute_dtype)

    out = pl.pallas_call(
        kernel,
        out_shape=jax.ShapeDtypeStruct((B, C + Cout, N), jnp.float32),
        grid_spec=pltpu.PrefetchScalarGridSpec(
            num_scalar_prefetch=0,
            grid=(B, nt),
            in_specs=[
                pl.BlockSpec((1, C, N), lambda b, t: (b, 0, 0)),    # x, full N
                pl.BlockSpec((1, C, tn), lambda b, t: (b, 0, t)),   # x, node tile
                pl.BlockSpec((1, 1, 1, k * tn),
                             lambda b, t: (b, t, 0, 0)),            # neighbour ids
                pl.BlockSpec((Cout, C), lambda b, t: (0, 0)),       # W1
                pl.BlockSpec((Cout, C), lambda b, t: (0, 0)),       # W2
                pl.BlockSpec((Cout, 1), lambda b, t: (0, 0)),       # bias
            ],
            out_specs=pl.BlockSpec((1, C + Cout, tn), lambda b, t: (b, 0, t)),
        ),
        compiler_params=pltpu.CompilerParams(
            dimension_semantics=("parallel", "parallel"),
            vmem_limit_bytes=64 * 1024 * 1024,   # explicit; v7x has 64 MiB VMEM
        ),
    )(x_bcn, x_bcn, idx_flat, w1, w2, b2)

    return out[..., None]                                     # (B, C+Cout, N, 1)


# --------------------------------------------------------------------------- #
# Pure-JAX reference mirroring the PyTorch forward
# --------------------------------------------------------------------------- #
def dense_dyn_block2d_ref(x_nchw, weight, bias, *, k=9):
    x_bcn = x_nchw[..., 0]                                    # (B, C, N)
    nbr = _knn_graph(x_bcn, k)                                # (B, N, K)
    x_j = jax.vmap(lambda xb, ib: xb[:, ib])(x_bcn, nbr)      # (B, C, N, K)
    x_i = x_bcn[..., None]                                    # centre feature
    aggr = jnp.max(x_j - x_i, axis=-1, keepdims=True)         # (B, C, N, 1)
    cat = jnp.concatenate([x_nchw, aggr], axis=1)             # (B, 2C, N, 1)
    dense = jnp.einsum('oc,bcnw->bonw', weight, cat) + bias[None, :, None, None]
    dense = jnp.maximum(dense, 0.0)
    return jnp.concatenate([x_nchw, dense], axis=1)           # (B, C+Cout, N, 1)


if __name__ == "__main__":
    key = jax.random.PRNGKey(0)
    B, C, N, K, Cout = 2, 4, 16, 9, 8
    k1, k2, k3 = jax.random.split(key, 3)

    x = jax.random.normal(k1, (B, C, N, 1), dtype=jnp.float32)
    # Conv2d(2C, Cout, kernel_size=1, bias=True) parameters; act='relu', norm=None.
    weight = jax.random.normal(k2, (Cout, 2 * C), dtype=jnp.float32) * 0.1
    bias = jax.random.normal(k3, (Cout,), dtype=jnp.float32) * 0.1

    out = jax.block_until_ready(dense_dyn_block2d_pallas(x, weight, bias, k=K))
    ref = dense_dyn_block2d_ref(x, weight, bias, k=K)

    assert out.shape == (B, C + Cout, N, 1), out.shape
    assert jnp.allclose(out, ref, atol=1e-5, rtol=1e-5), "f32 mismatch vs reference"

    # bf16 MXU path (review suggestion, mainly for v5e): selection matrix is
    # exact in bf16, only the conv path rounds -> looser tolerance.
    out_bf16 = jax.block_until_ready(
        dense_dyn_block2d_pallas(x, weight, bias, k=K,
                                 compute_dtype=jnp.bfloat16))
    assert jnp.allclose(out_bf16, ref, atol=3e-2, rtol=3e-2), "bf16 mismatch vs reference"

    print("KERNEL_OK")
</pallas_src>

<mosaic_0001>
module attributes {stable_mosaic.version = 11 : i64} {
  func.func @_dense_dyn_block_kernel(%arg0: i32, %arg1: i32, %arg2: memref<1x4x16xf32, #tpu.memory_space<vmem>>, %arg3: memref<1x4x16xf32, #tpu.memory_space<vmem>>, %arg4: memref<1x1x1x144xi32, #tpu.memory_space<vmem>>, %arg5: memref<8x4xf32, #tpu.memory_space<vmem>>, %arg6: memref<8x4xf32, #tpu.memory_space<vmem>>, %arg7: memref<8x1xf32, #tpu.memory_space<vmem>>, %arg8: memref<1x12x16xf32, #tpu.memory_space<vmem>>) attributes {dimension_semantics = [#tpu.dimension_semantics<parallel>, #tpu.dimension_semantics<parallel>], iteration_bounds = array<i64: 2, 1>, scalar_prefetch = 0 : i64, scratch_operands = 0 : i64, tpu.core_type = #tpu.core_type<tc>, window_params = [{transform_indices = @transform_0, window_bounds = array<i64: 1, 4, 16>}, {transform_indices = @transform_1, window_bounds = array<i64: 1, 4, 16>}, {transform_indices = @transform_2, window_bounds = array<i64: 1, 1, 1, 144>}, {pipeline_mode = #tpu.pipeline_mode<synchronous>, transform_indices = @transform_3, window_bounds = array<i64: 8, 4>}, {pipeline_mode = #tpu.pipeline_mode<synchronous>, transform_indices = @transform_4, window_bounds = array<i64: 8, 4>}, {pipeline_mode = #tpu.pipeline_mode<synchronous>, transform_indices = @transform_5, window_bounds = array<i64: 8, 1>}, {transform_indices = @transform_6, window_bounds = array<i64: 1, 12, 16>}]} {
    %c0 = arith.constant 0 : index
    %c0_0 = arith.constant 0 : index
    %c0_1 = arith.constant 0 : index
    %0 = vector.load %arg2[%c0, %c0_0, %c0_1] : memref<1x4x16xf32, #tpu.memory_space<vmem>>, vector<1x4x16xf32>
    %1 = vector.shape_cast %0 : vector<1x4x16xf32> to vector<4x16xf32>
    %c0_2 = arith.constant 0 : index
    %c0_3 = arith.constant 0 : index
    %c0_4 = arith.constant 0 : index
    %2 = vector.load %arg3[%c0_2, %c0_3, %c0_4] : memref<1x4x16xf32, #tpu.memory_space<vmem>>, vector<1x4x16xf32>
    %3 = vector.shape_cast %2 : vector<1x4x16xf32> to vector<4x16xf32>
    %c0_5 = arith.constant 0 : index
    %c0_6 = arith.constant 0 : index
    %c0_7 = arith.constant 0 : index
    %c0_8 = arith.constant 0 : index
    %4 = vector.load %arg4[%c0_5, %c0_6, %c0_7, %c0_8] : memref<1x1x1x144xi32, #tpu.memory_space<vmem>>, vector<1x1x1x144xi32>
    %5 = vector.shape_cast %4 : vector<1x1x1x144xi32> to vector<1x144xi32>
    %6 = tpu.iota {dimensions = array<i32: 0>} : vector<16x144xi32>
    %7 = vector.broadcast %5 : vector<1x144xi32> to vector<16x144xi32>
    %8 = arith.cmpi eq, %6, %7 : vector<16x144xi32>
    %9 = arith.extui %8 : vector<16x144xi1> to vector<16x144xi32>
    %10 = arith.sitofp %9 : vector<16x144xi32> to vector<16x144xf32>
    %cst = arith.constant dense<0.000000e+00> : vector<4x144xf32>
    %11 = tpu.matmul %1, %10, %cst {dimension_numbers = #tpu.dot_dimension_numbers<[1], [0], [0], [1], [0, 0, 1, 1], [], []>} : vector<4x16xf32>, vector<16x144xf32>, vector<4x144xf32> -> vector<4x144xf32>
    %12 = vector.extract_strided_slice %11 {offsets = [0, 0], sizes = [4, 16], strides = [1, 1]} : vector<4x144xf32> to vector<4x16xf32>
    %13 = vector.extract_strided_slice %11 {offsets = [0, 16], sizes = [4, 16], strides = [1, 1]} : vector<4x144xf32> to vector<4x16xf32>
    %14 = vector.extract_strided_slice %11 {offsets = [0, 32], sizes = [4, 16], strides = [1, 1]} : vector<4x144xf32> to vector<4x16xf32>
    %15 = vector.extract_strided_slice %11 {offsets = [0, 48], sizes = [4, 16], strides = [1, 1]} : vector<4x144xf32> to vector<4x16xf32>
    %16 = vector.extract_strided_slice %11 {offsets = [0, 64], sizes = [4, 16], strides = [1, 1]} : vector<4x144xf32> to vector<4x16xf32>
    %17 = vector.extract_strided_slice %11 {offsets = [0, 80], sizes = [4, 16], strides = [1, 1]} : vector<4x144xf32> to vector<4x16xf32>
    %18 = vector.extract_strided_slice %11 {offsets = [0, 96], sizes = [4, 16], strides = [1, 1]} : vector<4x144xf32> to vector<4x16xf32>
    %19 = vector.extract_strided_slice %11 {offsets = [0, 112], sizes = [4, 16], strides = [1, 1]} : vector<4x144xf32> to vector<4x16xf32>
    %20 = vector.extract_strided_slice %11 {offsets = [0, 128], sizes = [4, 16], strides = [1, 1]} : vector<4x144xf32> to vector<4x16xf32>
    %21 = arith.maximumf %12, %13 : vector<4x16xf32>
    %22 = arith.maximumf %14, %15 : vector<4x16xf32>
    %23 = arith.maximumf %16, %17 : vector<4x16xf32>
    %24 = arith.maximumf %18, %19 : vector<4x16xf32>
    %25 = arith.maximumf %21, %22 : vector<4x16xf32>
    %26 = arith.maximumf %23, %24 : vector<4x16xf32>
    %27 = arith.maximumf %25, %26 : vector<4x16xf32>
    %28 = arith.maximumf %27, %20 : vector<4x16xf32>
    %29 = arith.subf %28, %3 : vector<4x16xf32>
    %c0_9 = arith.constant 0 : index
    %c0_10 = arith.constant 0 : index
    %30 = vector.load %arg5[%c0_9, %c0_10] : memref<8x4xf32, #tpu.memory_space<vmem>>, vector<8x4xf32>
    %cst_11 = arith.constant dense<0.000000e+00> : vector<8x16xf32>
    %31 = tpu.matmul %30, %3, %cst_11 {dimension_numbers = #tpu.dot_dimension_numbers<[1], [0], [0], [1], [0, 0, 1, 1], [], []>} : vector<8x4xf32>, vector<4x16xf32>, vector<8x16xf32> -> vector<8x16xf32>
    %c0_12 = arith.constant 0 : index
    %c0_13 = arith.constant 0 : index
    %32 = vector.load %arg6[%c0_12, %c0_13] : memref<8x4xf32, #tpu.memory_space<vmem>>, vector<8x4xf32>
    %cst_14 = arith.constant dense<0.000000e+00> : vector<8x16xf32>
    %33 = tpu.matmul %32, %29, %cst_14 {dimension_numbers = #tpu.dot_dimension_numbers<[1], [0], [0], [1], [0, 0, 1, 1], [], []>} : vector<8x4xf32>, vector<4x16xf32>, vector<8x16xf32> -> vector<8x16xf32>
    %34 = arith.addf %31, %33 : vector<8x16xf32>
    %c0_15 = arith.constant 0 : index
    %c0_16 = arith.constant 0 : index
    %35 = vector.load %arg7[%c0_15, %c0_16] : memref<8x1xf32, #tpu.memory_space<vmem>>, vector<8x1xf32>
    %36 = vector.broadcast %35 : vector<8x1xf32> to vector<8x16xf32>
    %37 = arith.addf %34, %36 : vector<8x16xf32>
    %cst_17 = arith.constant 0.000000e+00 : f32
    %38 = vector.broadcast %cst_17 : f32 to vector<8x16xf32>
    %39 = arith.maximumf %37, %38 : vector<8x16xf32>
    %c0_18 = arith.constant 0 : index
    %c0_19 = arith.constant 0 : index
    %c0_20 = arith.constant 0 : index
    %40 = vector.load %arg8[%c0_18, %c0_19, %c0_20] : memref<1x12x16xf32, #tpu.memory_space<vmem>>, vector<1x4x16xf32>
    %41 = vector.shape_cast %40 : vector<1x4x16xf32> to vector<4x16xf32>
    %42 = vector.shape_cast %3 : vector<4x16xf32> to vector<1x4x16xf32>
    tpu.vector_store %arg8[%c0_18, %c0_19, %c0_20], %42 {strides = array<i32>} : memref<1x12x16xf32, #tpu.memory_space<vmem>>, vector<1x4x16xf32>,
    %c0_21 = arith.constant 0 : index
    %c4 = arith.constant 4 : index
    %c0_22 = arith.constant 0 : index
    %43 = vector.load %arg8[%c0_21, %c4, %c0_22] : memref<1x12x16xf32, #tpu.memory_space<vmem>>, vector<1x8x16xf32>
    %44 = vector.shape_cast %43 : vector<1x8x16xf32> to vector<8x16xf32>
    %45 = vector.shape_cast %39 : vector<8x16xf32> to vector<1x8x16xf32>
    tpu.vector_store %arg8[%c0_21, %c4, %c0_22], %45 {strides = array<i32>} : memref<1x12x16xf32, #tpu.memory_space<vmem>>, vector<1x8x16xf32>,
    return
  }
  func.func @transform_0(%arg0: i32, %arg1: i32) -> (i32, i32, i32) {
    %c0_i32 = arith.constant 0 : i32
    %c0_i32_0 = arith.constant 0 : i32
    %c0_i32_1 = arith.constant 0 : i32
    return %arg0, %c0_i32, %c0_i32_0 : i32, i32, i32
  }
  func.func @transform_1(%arg0: i32, %arg1: i32) -> (i32, i32, i32) {
    %c0_i32 = arith.constant 0 : i32
    %c0_i32_0 = arith.constant 0 : i32
    return %arg0, %c0_i32, %arg1 : i32, i32, i32
  }
  func.func @transform_2(%arg0: i32, %arg1: i32) -> (i32, i32, i32, i32) {
    %c0_i32 = arith.constant 0 : i32
    %c0_i32_0 = arith.constant 0 : i32
    %c0_i32_1 = arith.constant 0 : i32
    return %arg0, %arg1, %c0_i32, %c0_i32_0 : i32, i32, i32, i32
  }
  func.func @transform_3(%arg0: i32, %arg1: i32) -> (i32, i32) {
    %c0_i32 = arith.constant 0 : i32
    %c0_i32_0 = arith.constant 0 : i32
    %c0_i32_1 = arith.constant 0 : i32
    return %c0_i32, %c0_i32_0 : i32, i32
  }
  func.func @transform_4(%arg0: i32, %arg1: i32) -> (i32, i32) {
    %c0_i32 = arith.constant 0 : i32
    %c0_i32_0 = arith.constant 0 : i32
    %c0_i32_1 = arith.constant 0 : i32
    return %c0_i32, %c0_i32_0 : i32, i32
  }
  func.func @transform_5(%arg0: i32, %arg1: i32) -> (i32, i32) {
    %c0_i32 = arith.constant 0 : i32
    %c0_i32_0 = arith.constant 0 : i32
    %c0_i32_1 = arith.constant 0 : i32
    return %c0_i32, %c0_i32_0 : i32, i32
  }
  func.func @transform_6(%arg0: i32, %arg1: i32) -> (i32, i32, i32) {
    %c0_i32 = arith.constant 0 : i32
    %c0_i32_0 = arith.constant 0 : i32
    return %arg0, %c0_i32, %arg1 : i32, i32, i32
  }
}

</mosaic_0001>

<llo_original>
// kernel: tpu_custom_call.1
$region0: #{tpu_custom_call.1}
  #allocation0 [shape = 'u32[]', space=smem, size = 0x4, offset = 0x4, fixed_abs, tag = 'smem constant byte address 0x4 - core index']
  #allocation1 [shape = 'u32[144,128]{1,0:T(1,128)}', space=vmem, size = 0x12000, scoped, tag = 'internal scratch']
  %s0 = inlined_call_operand.vmem [shape: f32[2,4,16], index: 0, kind: input, shape index: {}]
  %s1 = inlined_call_operand.vmem [shape: f32[2,4,16], index: 1, kind: input, shape index: {}]
  %s2 = inlined_call_operand.vmem [shape: s32[2,1,1,144], index: 2, kind: input, shape index: {}]
  %s3 = inlined_call_operand.vmem [shape: f32[8,4], index: 3, kind: input, shape index: {}]
  %s4 = inlined_call_operand.vmem [shape: f32[8,4], index: 4, kind: input, shape index: {}]
  %s5 = inlined_call_operand.vmem [shape: f32[8,1], index: 5, kind: input, shape index: {}]
  %s6 = inlined_call_operand.vmem [shape: f32[2,12,16], index: 6, kind: output, shape index: {}]
  %s7 = sld [smem:[#allocation0]]
  $region57: #{tpu_custom_call.1} parent=0
    _
  %s9 = ssub.s32 1, %s7
  %s10 = scalar_select 0, %s9, %s7
  loop: start=0, step=1, limit=4
  $region2: #{tpu_custom_call.1} parent=0 // loop_pre_header
    _
  $region3: #{tpu_custom_call.1} parent=0 // loop_header
    %s12 = sphi 0, %s16
    %p13 = scmp.ge.s32.totalorder %s12, 4
    %s19 = sphi 0, %s31
    %s20 = sphi 0, %s27
    %s21 = sphi 0, %s19
    %s22 = sphi 0, %s20
    %s23 = sphi 0, %s21
    %s24 = sphi 0, %s22
    %s34 = sphi 0, %s36
    %s37 = sphi 0, %s34
    %s38 = sphi 0, %s37
    %s54 = sphi 0, %s38
    %s62 = sphi 0, %s64
    %s65 = sphi 0, %s62
    %s66 = sphi 0, %s65
    %s82 = sphi 0, %s66
    %s90 = sphi 0, %s92
    %s93 = sphi 0, %s90
    %s94 = sphi 0, %s93
    %s110 = sphi 0, %s94
    %s114 = sphi 0, %s114
    %s116 = sphi 0, %s114
    %s117 = sphi 0, %s116
    %s131 = sphi 0, %s117
    %s135 = sphi 0, %s135
    %s137 = sphi 0, %s135
    %s138 = sphi 0, %s137
    %s152 = sphi 0, %s138
    %s156 = sphi 0, %s156
    %s158 = sphi 0, %s156
    %s159 = sphi 0, %s158
    %s173 = sphi 0, %s159
    %s181 = sphi 0, %s183
    %s184 = sphi 0, %s181
    %s185 = sphi 0, %s184
    %s201 = sphi 0, %s185
  $region4: #{tpu_custom_call.1} parent=0 // loop_header_branch
    %15 = sbr.rel (%p13) target = $region8
  $region5: #{tpu_custom_call.1} parent=0 // loop_body
    %s17 = ssub.s32 %s12, 1
    %s18 = ssub.s32 %s12, 2
    %s25 = sadd.s32 1, %s20
    %p26 = scmp.ge.s32.totalorder %s25, 1
    %s27 = scalar_select %p26, 0, %s25
    %s28 = sadd.s32 1, %s19
    %s29 = scalar_select %p26, %s28, %s19
    %p30 = scmp.ge.s32.totalorder %s29, 2
    %s31 = scalar_select %p30, 0, %s29
    %s32 = ssub.s32 %s19, %s31
    %p33 = scmp.eq.s32.totalorder %s32, 0
    %s35 = sadd.s32 %s34, 1
    %s36 = scalar_select %p33, %s34, %s35
    %p39 = pneg %p33
    %p40 = scmp.eq.s32.totalorder %s12, 1
    %p41 = por %p39, %p40
    %p42 = scmp.ne.s32.totalorder %s34, %s37
    %p43 = scmp.eq.s32.totalorder %s12, 0
    %p44 = por %p42, %p43
    %p45 = scmp.ne.s32.totalorder %s34, %s37
    %p46 = scmp.eq.s32.totalorder %s17, 1
    %p47 = por %p45, %p46
    %p48 = scmp.ne.s32.totalorder %s37, %s38
    %p49 = scmp.eq.s32.totalorder %s17, 0
    %p50 = por %p48, %p49
    %p51 = scmp.ne.s32.totalorder %s37, %s38
    %p52 = scmp.eq.s32.totalorder %s18, 1
    %p53 = por %p51, %p52
    %p55 = scmp.ne.s32.totalorder %s38, %s54
    %p56 = scmp.eq.s32.totalorder %s18, 0
    %p57 = por %p55, %p56
    %s58 = ssub.s32 %s19, %s31
    %s59 = ssub.s32 %s20, %s27
    %s60 = sor.u32 %s58, %s59
    %p61 = scmp.eq.s32.totalorder %s60, 0
    %s63 = sadd.s32 %s62, 1
    %s64 = scalar_select %p61, %s62, %s63
    %p67 = pneg %p61
    %p68 = scmp.eq.s32.totalorder %s12, 1
    %p69 = por %p67, %p68
    %p70 = scmp.ne.s32.totalorder %s62, %s65
    %p71 = scmp.eq.s32.totalorder %s12, 0
    %p72 = por %p70, %p71
    %p73 = scmp.ne.s32.totalorder %s62, %s65
    %p74 = scmp.eq.s32.totalorder %s17, 1
    %p75 = por %p73, %p74
    %p76 = scmp.ne.s32.totalorder %s65, %s66
    %p77 = scmp.eq.s32.totalorder %s17, 0
    %p78 = por %p76, %p77
    %p79 = scmp.ne.s32.totalorder %s65, %s66
    %p80 = scmp.eq.s32.totalorder %s18, 1
    %p81 = por %p79, %p80
    %p83 = scmp.ne.s32.totalorder %s66, %s82
    %p84 = scmp.eq.s32.totalorder %s18, 0
    %p85 = por %p83, %p84
    %s86 = ssub.s32 %s19, %s31
    %s87 = ssub.s32 %s20, %s27
    %s88 = sor.u32 %s86, %s87
    %p89 = scmp.eq.s32.totalorder %s88, 0
    %s91 = sadd.s32 %s90, 1
    %s92 = scalar_select %p89, %s90, %s91
    %p95 = pneg %p89
    %p96 = scmp.eq.s32.totalorder %s12, 1
    %p97 = por %p95, %p96
    %p98 = scmp.ne.s32.totalorder %s90, %s93
    %p99 = scmp.eq.s32.totalorder %s12, 0
    %p100 = por %p98, %p99
    %p101 = scmp.ne.s32.totalorder %s90, %s93
    %p102 = scmp.eq.s32.totalorder %s17, 1
    %p103 = por %p101, %p102
    %p104 = scmp.ne.s32.totalorder %s93, %s94
    %p105 = scmp.eq.s32.totalorder %s17, 0
    %p106 = por %p104, %p105
    %p107 = scmp.ne.s32.totalorder %s93, %s94
    %p108 = scmp.eq.s32.totalorder %s18, 1
    %p109 = por %p107, %p108
    %p111 = scmp.ne.s32.totalorder %s94, %s110
    %p112 = scmp.eq.s32.totalorder %s18, 0
    %p113 = por %p111, %p112
    %s115 = sadd.s32 %s114, 1
    %p118 = scmp.eq.s32.totalorder %s12, 1
    %p119 = scmp.ne.s32.totalorder %s114, %s116
    %p120 = scmp.eq.s32.totalorder %s12, 0
    %p121 = por %p119, %p120
    %p122 = scmp.ne.s32.totalorder %s114, %s116
    %p123 = scmp.eq.s32.totalorder %s17, 1
    %p124 = por %p122, %p123
    %p125 = scmp.ne.s32.totalorder %s116, %s117
    %p126 = scmp.eq.s32.totalorder %s17, 0
    %p127 = por %p125, %p126
    %p128 = scmp.ne.s32.totalorder %s116, %s117
    %p129 = scmp.eq.s32.totalorder %s18, 1
    %p130 = por %p128, %p129
    %p132 = scmp.ne.s32.totalorder %s117, %s131
    %p133 = scmp.eq.s32.totalorder %s18, 0
    %p134 = por %p132, %p133
    %s136 = sadd.s32 %s135, 1
    %p139 = scmp.eq.s32.totalorder %s12, 1
    %p140 = scmp.ne.s32.totalorder %s135, %s137
    %p141 = scmp.eq.s32.totalorder %s12, 0
    %p142 = por %p140, %p141
    %p143 = scmp.ne.s32.totalorder %s135, %s137
    %p144 = scmp.eq.s32.totalorder %s17, 1
    %p145 = por %p143, %p144
    %p146 = scmp.ne.s32.totalorder %s137, %s138
    %p147 = scmp.eq.s32.totalorder %s17, 0
    %p148 = por %p146, %p147
    %p149 = scmp.ne.s32.totalorder %s137, %s138
    %p150 = scmp.eq.s32.totalorder %s18, 1
    %p151 = por %p149, %p150
    %p153 = scmp.ne.s32.totalorder %s138, %s152
    %p154 = scmp.eq.s32.totalorder %s18, 0
    %p155 = por %p153, %p154
    %s157 = sadd.s32 %s156, 1
    %p160 = scmp.eq.s32.totalorder %s12, 1
    %p161 = scmp.ne.s32.totalorder %s156, %s158
    %p162 = scmp.eq.s32.totalorder %s12, 0
    %p163 = por %p161, %p162
    %p164 = scmp.ne.s32.totalorder %s156, %s158
    %p165 = scmp.eq.s32.totalorder %s17, 1
    %p166 = por %p164, %p165
    %p167 = scmp.ne.s32.totalorder %s158, %s159
    %p168 = scmp.eq.s32.totalorder %s17, 0
    %p169 = por %p167, %p168
    %p170 = scmp.ne.s32.totalorder %s158, %s159
    %p171 = scmp.eq.s32.totalorder %s18, 1
    %p172 = por %p170, %p171
    %p174 = scmp.ne.s32.totalorder %s159, %s173
    %p175 = scmp.eq.s32.totalorder %s18, 0
    %p176 = por %p174, %p175
    %s177 = ssub.s32 %s19, %s31
    %s178 = ssub.s32 %s20, %s27
    %s179 = sor.u32 %s177, %s178
    %p180 = scmp.eq.s32.totalorder %s179, 0
    %s182 = sadd.s32 %s181, 1
    %s183 = scalar_select %p180, %s181, %s182
    %p186 = pneg %p180
    %p187 = scmp.eq.s32.totalorder %s12, 1
    %p188 = por %p186, %p187
    %p189 = scmp.ne.s32.totalorder %s181, %s184
    %p190 = scmp.eq.s32.totalorder %s12, 0
    %p191 = por %p189, %p190
    %p192 = scmp.ne.s32.totalorder %s181, %s184
    %p193 = scmp.eq.s32.totalorder %s17, 1
    %p194 = por %p192, %p193
    %p195 = scmp.ne.s32.totalorder %s184, %s185
    %p196 = scmp.eq.s32.totalorder %s17, 0
    %p197 = por %p195, %p196
    %p198 = scmp.ne.s32.totalorder %s184, %s185
    %p199 = scmp.eq.s32.totalorder %s18, 1
    %p200 = por %p198, %p199
    %p202 = scmp.ne.s32.totalorder %s185, %s201
    %p203 = scmp.eq.s32.totalorder %s18, 0
    %p204 = por %p202, %p203
    %p205 = scmp.le.s32.totalorder 1, %s12
    %p206 = scmp.lt.s32.totalorder %s12, 3
    %p207 = pnand %p205, %p206
    %p208 = pneg %p207
    // Predicated region
    $region9: #{tpu_custom_call.1} parent=5 // pred_check
      _
    $region10: #{tpu_custom_call.1} parent=5 // pred_check_branch
      %210 = sbr.rel (%p207) target = $region12
    $region11: #{tpu_custom_call.1} parent=5 // pred_region
      %s211 = ssub.s32 %s12, 1
      // Predicated region
      $region13: #{tpu_custom_call.1} parent=11 // pred_check
        %p212 = pneg %p127
      $region14: #{tpu_custom_call.1} parent=11 // pred_check_branch
        %214 = sbr.rel (%p212) target = $region16
      $region15: #{tpu_custom_call.1} parent=11 // pred_region
        _
      $region16: #{tpu_custom_call.1} parent=11 // pred_fallthru
        _
      // Predicated region
      $region17: #{tpu_custom_call.1} parent=11 // pred_check
        %p215 = pneg %p148
      $region18: #{tpu_custom_call.1} parent=11 // pred_check_branch
        %217 = sbr.rel (%p215) target = $region20
      $region19: #{tpu_custom_call.1} parent=11 // pred_region
        _
      $region20: #{tpu_custom_call.1} parent=11 // pred_fallthru
        _
      // Predicated region
      $region21: #{tpu_custom_call.1} parent=11 // pred_check
        %p218 = pneg %p169
      $region22: #{tpu_custom_call.1} parent=11 // pred_check_branch
        %220 = sbr.rel (%p218) target = $region24
      $region23: #{tpu_custom_call.1} parent=11 // pred_region
        _
      $region24: #{tpu_custom_call.1} parent=11 // pred_fallthru
        _
    $region12: #{tpu_custom_call.1} parent=5 // pred_fallthru
      _
    %p221 = scmp.lt.s32.totalorder %s12, 2
    // Predicated region
    $region25: #{tpu_custom_call.1} parent=5 // pred_check
      %p222 = pneg %p221
    $region26: #{tpu_custom_call.1} parent=5 // pred_check_branch
      %224 = sbr.rel (%p222) target = $region28
    $region27: #{tpu_custom_call.1} parent=5 // pred_region
      // Predicated region
      $region29: #{tpu_custom_call.1} parent=27 // pred_check
        %p225 = pneg %p44
      $region30: #{tpu_custom_call.1} parent=27 // pred_check_branch
        %227 = sbr.rel (%p225) target = $region32
      $region31: #{tpu_custom_call.1} parent=27 // pred_region
        %p228 = scmp.lt.s32.totalorder %s19, 1
        %s229 = scalar_select %p228, %s19, 1
        %s230 = smul.addr %s229, 4
        %s231 = scalar_lea.vmem %s0, %s230
      $region32: #{tpu_custom_call.1} parent=27 // pred_fallthru
        _
      // Predicated region
      $region33: #{tpu_custom_call.1} parent=27 // pred_check
        %p232 = pneg %p72
      $region34: #{tpu_custom_call.1} parent=27 // pred_check_branch
        %234 = sbr.rel (%p232) target = $region36
      $region35: #{tpu_custom_call.1} parent=27 // pred_region
        %p235 = scmp.lt.s32.totalorder %s19, 1
        %s236 = scalar_select %p235, %s19, 1
        %p237 = scmp.lt.s32.totalorder %s20, 0
        %s238 = scalar_select %p237, %s20, 0
        %s239 = sadd.s32 %s238, %s236
        %s240 = smul.addr %s239, 4
        %s241 = scalar_lea.vmem %s1, %s240
      $region36: #{tpu_custom_call.1} parent=27 // pred_fallthru
        _
      // Predicated region
      $region37: #{tpu_custom_call.1} parent=27 // pred_check
        %p242 = pneg %p100
      $region38: #{tpu_custom_call.1} parent=27 // pred_check_branch
        %244 = sbr.rel (%p242) target = $region40
      $region39: #{tpu_custom_call.1} parent=27 // pred_region
        %p245 = scmp.lt.s32.totalorder %s19, 1
        %s246 = scalar_select %p245, %s19, 1
        %p247 = scmp.lt.s32.totalorder %s20, 0
        %s248 = scalar_select %p247, %s20, 0
        %s249 = smul.addr %s248, 2
        %s250 = smul.addr %s246, 2
        %s251 = sadd.s32 %s249, %s250
        %s252 = scalar_lea.vmem %s2, %s251
      $region40: #{tpu_custom_call.1} parent=27 // pred_fallthru
        _
    $region28: #{tpu_custom_call.1} parent=5 // pred_fallthru
      _
    %p253 = scmp.le.s32.totalorder 1, %s12
    %p254 = scmp.lt.s32.totalorder %s12, 3
    %p255 = pnand %p253, %p254
    %p256 = pneg %p255
    // Predicated region
    $region41: #{tpu_custom_call.1} parent=5 // pred_check
      _
    $region42: #{tpu_custom_call.1} parent=5 // pred_check_branch
      %258 = sbr.rel (%p255) target = $region44
    $region43: #{tpu_custom_call.1} parent=5 // pred_region
      %s259 = ssub.s32 %s12, 1
      %p260 = scmp.lt.s32.totalorder %s21, 1
      %s261 = scalar_select %p260, %s21, 1
      %s262 = smul.addr %s261, 4
      %s263 = scalar_lea.vmem %s0, %s262
      %p264 = pneg %p50
      %p265 = pneg %p47
      %p266 = scmp.lt.s32.totalorder %s21, 1
      %s267 = scalar_select %p266, %s21, 1
      %p268 = scmp.lt.s32.totalorder %s22, 0
      %s269 = scalar_select %p268, %s22, 0
      %s270 = sadd.s32 %s269, %s267
      %s271 = smul.addr %s270, 4
      %s272 = scalar_lea.vmem %s1, %s271
      %p273 = pneg %p78
      %p274 = pneg %p75
      %p275 = scmp.lt.s32.totalorder %s21, 1
      %s276 = scalar_select %p275, %s21, 1
      %p277 = scmp.lt.s32.totalorder %s22, 0
      %s278 = scalar_select %p277, %s22, 0
      %s279 = smul.addr %s278, 2
      %s280 = smul.addr %s276, 2
      %s281 = sadd.s32 %s279, %s280
      %s282 = scalar_lea.vmem %s2, %s281
      %p283 = pneg %p106
      %p284 = pneg %p103
      %p285 = pneg %p127
      %p286 = pneg %p124
      %p287 = pneg %p148
      %p288 = pneg %p145
      %p289 = pneg %p169
      %p290 = pneg %p166
      %p291 = pneg %p197
      %p292 = pneg %p194
      %p293 = scmp.lt.s32.totalorder %s21, 1
      %s294 = scalar_select %p293, %s21, 1
      %p295 = scmp.lt.s32.totalorder %s22, 0
      %s296 = scalar_select %p295, %s22, 0
      %s297 = smul.addr %s294, 2
      %s298 = sadd.s32 %s296, %s297
      %s299 = smul.addr %s298, 8
      %s300 = scalar_lea.vmem %s6, %s299
      %p301 = scmp.lt.s32.totalorder %s21, 1
      %s302 = scalar_select %p301, %s21, 1
      %s303 = smul.addr %s302, 4
      %s304 = scalar_lea.vmem %s0, %s303
      %p305 = scmp.lt.s32.totalorder %s21, 1
      %s306 = scalar_select %p305, %s21, 1
      %p307 = scmp.lt.s32.totalorder %s22, 0
      %s308 = scalar_select %p307, %s22, 0
      %s309 = sadd.s32 %s308, %s306
      %s310 = smul.addr %s309, 4
      %s311 = scalar_lea.vmem %s1, %s310
      %p312 = scmp.lt.s32.totalorder %s21, 1
      %s313 = scalar_select %p312, %s21, 1
      %p314 = scmp.lt.s32.totalorder %s22, 0
      %s315 = scalar_select %p314, %s22, 0
      %s316 = smul.addr %s315, 2
      %s317 = smul.addr %s313, 2
      %s318 = sadd.s32 %s316, %s317
      %s319 = scalar_lea.vmem %s2, %s318
      %p320 = scmp.lt.s32.totalorder %s21, 1
      %s321 = scalar_select %p320, %s21, 1
      %p322 = scmp.lt.s32.totalorder %s22, 0
      %s323 = scalar_select %p322, %s22, 0
      %s324 = smul.addr %s321, 2
      %s325 = sadd.s32 %s323, %s324
      %s326 = smul.addr %s325, 8
      %s327 = scalar_lea.vmem %s6, %s326
      %v328 = vld [vmem:[%s304] sm:$0xf]
      %v329 = vld [vmem:[%s311] sm:$0xf]
      %v330 = vld [vmem:[%s319] sm:$0x3]
      %v331 = vlaneseq
      %v332 = vshrl.u32 %v331, 7
      %v333 = vadd.s32 %v332, 8
      %v334 = vlaneseq
      %v335 = vshrl.u32 %v334, 7
      %v336 = vsub.s32 0, %v335
      %v337 = vrot.slane %v330, %v336
      %v338 = vlaneseq
      %v339 = vshrl.u32 %v338, 7
      %v340 = vsub.s32 1, %v339
      %v341 = vrot.slane %v330, %v340
      %vm342 = vcmp.eq.s32.totalorder %v332, %v337
      %vm343 = vcmp.eq.s32.totalorder %v332, %v341
      %vm344 = vcmp.eq.s32.totalorder %v333, %v337
      %vm345 = vcmp.eq.s32.totalorder %v333, %v341
      %v346 = vsel %vm342, 1, 0
      %v347 = vsel %vm343, 1, 0
      %v348 = vsel %vm344, 1, 0
      %v349 = vsel %vm345, 1, 0
      %v350 = vcvt.s32.f32 %v346
      %v351 = vcvt.s32.f32 %v347
      %v352 = vcvt.s32.f32 %v348
      %v353 = vcvt.s32.f32 %v349
      %vm354 = vcmask 130048
      %v356 = vsel %vm354, %v328, 0
      %358 = vmatprep.subr.mxu0 0.0
      %359 = vmatpush1.msra.mxu0 0.0
      %360 = vmatprep.subr.mxu0 0.0
      %361 = vmatpush1.msra.mxu0 0.0
      %362 = vmatprep.subr.mxu0 0.0
      %363 = vmatpush1.msra.mxu0 0.0
      %364 = vmatprep.subr.mxu0 0.0
      %365 = vmatpush1.msra.mxu0 0.0
      %366 = vmatprep.subr.mxu0 0.0
      %367 = vmatpush1.msra.mxu0 0.0
      %368 = vmatprep.subr.mxu0 0.0
      %369 = vmatpush1.msra.mxu0 0.0
      %370 = vmatprep.subr.mxu0 0.0
      %371 = vmatpush1.msra.mxu0 0.0
      %372 = vmatprep.subr.mxu0 0.0
      %373 = vmatpush1.msra.mxu0 0.0
      %374 = vmatprep.subr.mxu0 0.0
      %375 = vmatpush1.msra.mxu0 0.0
      %376 = vmatprep.subr.mxu0 0.0
      %377 = vmatpush1.msra.mxu0 0.0
      %378 = vmatprep.subr.mxu0 0.0
      %379 = vmatpush1.msra.mxu0 0.0
      %380 = vmatprep.subr.mxu0 0.0
      %381 = vmatpush1.msra.mxu0 0.0
      %382 = vmatprep.subr.mxu0 0.0
      %383 = vmatpush1.msra.mxu0 0.0
      %384 = vmatprep.subr.mxu0 0.0
      %385 = vmatpush1.msra.mxu0 0.0
      %386 = vmatprep.subr.mxu0 %v353
      %387 = vmatpush1.msra.mxu0 %v352
      %388 = vmatprep.subr.mxu0 %v351
      %389 = vmatpush1.msra.mxu0 %v350
      %390 = vmatprep.subr.mxu0 0.0
      %391 = vmatpush2.msra.mxu0 0.0
      %392 = vmatprep.subr.mxu0 0.0
      %393 = vmatpush2.msra.mxu0 0.0
      %394 = vmatprep.subr.mxu0 0.0
      %395 = vmatpush2.msra.mxu0 0.0
      %396 = vmatprep.subr.mxu0 0.0
      %397 = vmatpush2.msra.mxu0 0.0
      %398 = vmatprep.subr.mxu0 0.0
      %399 = vmatpush2.msra.mxu0 0.0
      %400 = vmatprep.subr.mxu0 0.0
      %401 = vmatpush2.msra.mxu0 0.0
      %402 = vmatprep.subr.mxu0 0.0
      %403 = vmatpush2.msra.mxu0 0.0
      %404 = vmatprep.subr.mxu0 0.0
      %405 = vmatpush2.msra.mxu0 0.0
      %406 = vmatprep.subr.mxu0 0.0
      %407 = vmatpush2.msra.mxu0 0.0
      %408 = vmatprep.subr.mxu0 0.0
      %409 = vmatpush2.msra.mxu0 0.0
      %410 = vmatprep.subr.mxu0 0.0
      %411 = vmatpush2.msra.mxu0 0.0
      %412 = vmatprep.subr.mxu0 0.0
      %413 = vmatpush2.msra.mxu0 0.0
      %414 = vmatprep.subr.mxu0 0.0
      %415 = vmatpush2.msra.mxu0 0.0
      %416 = vmatprep.subr.mxu0 0.0
      %417 = vmatpush2.msra.mxu0 0.0
      %418 = vmatprep.subr.mxu0 0.0
      %419 = vmatpush2.msra.mxu0 0.0
      %420 = vmatprep.subr.mxu0 0.0
      %421 = vmatpush2.msra.mxu0 0.0
      %422 = vmatprep.mubr.f32.mxu0 0.0
      %423 = vmatmul.mubr.f32.gmra.mxu0 %v356
      %v424 = vpop.f32.mrf.mxu0
      %v425 = vadd.f32 0.0, %v424
      %v426 = vpop.f32.mrf.mxu0
      %v427 = vadd.f32 0.0, %v426
      %428 = vdwg.mxu0
      %430 = vrot.lane.b32.xlu0 %v425, 112
      %v431 = vpop.permute.xlu0 %430
      %v433 = vmax.f32 %v425, %v431
      %435 = vrot.lane.b32.xlu0 %v433, 96
      %v436 = vpop.permute.xlu0 %435
      %v438 = vmax.f32 %v433, %v436
      %440 = vrot.lane.b32.xlu0 %v438, 64
      %v441 = vpop.permute.xlu0 %440
      %v443 = vmax.f32 %v438, %v441
      %v444 = vmax.f32 %v443, %v427
      %v445 = vsub.f32 %v444, %v329
      %v446 = vld [vmem:[%s3] sm:$0xff]
      %v447 = vld [vmem:[%s4] sm:$0xff]
      %vm448 = vcmask 31744
      %v450 = vsel %vm448, %v447, 0
      %vm452 = vcmask 1043456
      %v454 = vsel %vm452, %v445, 0
      %456 = vmatprep.subr.mxu0 0.0
      %457 = vmatpush1.msra.mxu0 0.0
      %458 = vmatprep.subr.mxu0 0.0
      %459 = vmatpush1.msra.mxu0 0.0
      %460 = vmatprep.subr.mxu0 0.0
      %461 = vmatpush1.msra.mxu0 0.0
      %462 = vmatprep.subr.mxu0 0.0
      %463 = vmatpush1.msra.mxu0 0.0
      %464 = vmatprep.subr.mxu0 0.0
      %465 = vmatpush1.msra.mxu0 0.0
      %466 = vmatprep.subr.mxu0 0.0
      %467 = vmatpush1.msra.mxu0 0.0
      %468 = vmatprep.subr.mxu0 0.0
      %469 = vmatpush1.msra.mxu0 0.0
      %470 = vmatprep.subr.mxu0 0.0
      %471 = vmatpush1.msra.mxu0 0.0
      %472 = vmatprep.subr.mxu0 0.0
      %473 = vmatpush1.msra.mxu0 0.0
      %474 = vmatprep.subr.mxu0 0.0
      %475 = vmatpush1.msra.mxu0 0.0
      %476 = vmatprep.subr.mxu0 0.0
      %477 = vmatpush1.msra.mxu0 0.0
      %478 = vmatprep.subr.mxu0 0.0
      %479 = vmatpush1.msra.mxu0 0.0
      %480 = vmatprep.subr.mxu0 0.0
      %481 = vmatpush1.msra.mxu0 0.0
      %482 = vmatprep.subr.mxu0 0.0
      %483 = vmatpush1.msra.mxu0 0.0
      %484 = vmatprep.subr.mxu0 0.0
      %485 = vmatpush1.msra.mxu0 0.0
      %486 = vmatprep.subr.mxu0 0.0
      %487 = vmatpush1.msra.mxu0 %v454
      %488 = vmatprep.subr.mxu0 0.0
      %489 = vmatpush2.msra.mxu0 0.0
      %490 = vmatprep.subr.mxu0 0.0
      %491 = vmatpush2.msra.mxu0 0.0
      %492 = vmatprep.subr.mxu0 0.0
      %493 = vmatpush2.msra.mxu0 0.0
      %494 = vmatprep.subr.mxu0 0.0
      %495 = vmatpush2.msra.mxu0 0.0
      %496 = vmatprep.subr.mxu0 0.0
      %497 = vmatpush2.msra.mxu0 0.0
      %498 = vmatprep.subr.mxu0 0.0
      %499 = vmatpush2.msra.mxu0 0.0
      %500 = vmatprep.subr.mxu0 0.0
      %501 = vmatpush2.msra.mxu0 0.0
      %502 = vmatprep.subr.mxu0 0.0
      %503 = vmatpush2.msra.mxu0 0.0
      %504 = vmatprep.subr.mxu0 0.0
      %505 = vmatpush2.msra.mxu0 0.0
      %506 = vmatprep.subr.mxu0 0.0
      %507 = vmatpush2.msra.mxu0 0.0
      %508 = vmatprep.subr.mxu0 0.0
      %509 = vmatpush2.msra.mxu0 0.0
      %510 = vmatprep.subr.mxu0 0.0
      %511 = vmatpush2.msra.mxu0 0.0
      %512 = vmatprep.subr.mxu0 0.0
      %513 = vmatpush2.msra.mxu0 0.0
      %514 = vmatprep.subr.mxu0 0.0
      %515 = vmatpush2.msra.mxu0 0.0
      %516 = vmatprep.subr.mxu0 0.0
      %517 = vmatpush2.msra.mxu0 0.0
      %518 = vmatprep.subr.mxu0 0.0
      %519 = vmatpush2.msra.mxu0 0.0
      %520 = vmatprep.mubr.f32.mxu0 0.0
      %521 = vmatmul.mubr.f32.gmra.mxu0 %v450
      %v522 = vpop.f32.mrf.mxu0
      %v523 = vadd.f32 0.0, %v522
      %v524 = vpop.f32.mrf.mxu0
      %525 = vdwg.mxu0
      %v527 = vsel %vm448, %v446, 0
      %v530 = vsel %vm452, %v329, 0
      %532 = vmatprep.subr.mxu0 0.0
      %533 = vmatpush1.msra.mxu0 0.0
      %534 = vmatprep.subr.mxu0 0.0
      %535 = vmatpush1.msra.mxu0 0.0
      %536 = vmatprep.subr.mxu0 0.0
      %537 = vmatpush1.msra.mxu0 0.0
      %538 = vmatprep.subr.mxu0 0.0
      %539 = vmatpush1.msra.mxu0 0.0
      %540 = vmatprep.subr.mxu0 0.0
      %541 = vmatpush1.msra.mxu0 0.0
      %542 = vmatprep.subr.mxu0 0.0
      %543 = vmatpush1.msra.mxu0 0.0
      %544 = vmatprep.subr.mxu0 0.0
      %545 = vmatpush1.msra.mxu0 0.0
      %546 = vmatprep.subr.mxu0 0.0
      %547 = vmatpush1.msra.mxu0 0.0
      %548 = vmatprep.subr.mxu0 0.0
      %549 = vmatpush1.msra.mxu0 0.0
      %550 = vmatprep.subr.mxu0 0.0
      %551 = vmatpush1.msra.mxu0 0.0
      %552 = vmatprep.subr.mxu0 0.0
      %553 = vmatpush1.msra.mxu0 0.0
      %554 = vmatprep.subr.mxu0 0.0
      %555 = vmatpush1.msra.mxu0 0.0
      %556 = vmatprep.subr.mxu0 0.0
      %557 = vmatpush1.msra.mxu0 0.0
      %558 = vmatprep.subr.mxu0 0.0
      %559 = vmatpush1.msra.mxu0 0.0
      %560 = vmatprep.subr.mxu0 0.0
      %561 = vmatpush1.msra.mxu0 0.0
      %562 = vmatprep.subr.mxu0 0.0
      %563 = vmatpush1.msra.mxu0 %v530
      %564 = vmatprep.subr.mxu0 0.0
      %565 = vmatpush2.msra.mxu0 0.0
      %566 = vmatprep.subr.mxu0 0.0
      %567 = vmatpush2.msra.mxu0 0.0
      %568 = vmatprep.subr.mxu0 0.0
      %569 = vmatpush2.msra.mxu0 0.0
      %570 = vmatprep.subr.mxu0 0.0
      %571 = vmatpush2.msra.mxu0 0.0
      %572 = vmatprep.subr.mxu0 0.0
      %573 = vmatpush2.msra.mxu0 0.0
      %574 = vmatprep.subr.mxu0 0.0
      %575 = vmatpush2.msra.mxu0 0.0
      %576 = vmatprep.subr.mxu0 0.0
      %577 = vmatpush2.msra.mxu0 0.0
      %578 = vmatprep.subr.mxu0 0.0
      %579 = vmatpush2.msra.mxu0 0.0
      %580 = vmatprep.subr.mxu0 0.0
      %581 = vmatpush2.msra.mxu0 0.0
      %582 = vmatprep.subr.mxu0 0.0
      %583 = vmatpush2.msra.mxu0 0.0
      %584 = vmatprep.subr.mxu0 0.0
      %585 = vmatpush2.msra.mxu0 0.0
      %586 = vmatprep.subr.mxu0 0.0
      %587 = vmatpush2.msra.mxu0 0.0
      %588 = vmatprep.subr.mxu0 0.0
      %589 = vmatpush2.msra.mxu0 0.0
      %590 = vmatprep.subr.mxu0 0.0
      %591 = vmatpush2.msra.mxu0 0.0
      %592 = vmatprep.subr.mxu0 0.0
      %593 = vmatpush2.msra.mxu0 0.0
      %594 = vmatprep.subr.mxu0 0.0
      %595 = vmatpush2.msra.mxu0 0.0
      %596 = vmatprep.mubr.f32.mxu0 0.0
      %597 = vmatmul.mubr.f32.gmra.mxu0 %v527
      %v598 = vpop.f32.mrf.mxu0
      %v599 = vadd.f32 %v523, %v598
      %v600 = vpop.f32.mrf.mxu0
      %601 = vdwg.mxu0
      %v602 = vld [vmem:[%s5] sm:$0xff]
      %604 = vset.pattern.permute.xlu0 0
      %605 = vperm.xlu0 %604, %v602
      %v606 = vpop.permute.xlu0 %605
      %v608 = vadd.f32 %v599, %v606
      %v609 = vmax.f32 %v608, 0.0
      %vm610 = vcmask 125952
      %611 = vst.msk [vmem:[%s327] sm:$0xf] %vm610, %v329
      %612 = vst.msk [vmem:[%s327 + $0x4] sm:$0xff] %vm354, %v609
      %p613 = scmp.lt.s32.totalorder %s21, 1
      %s614 = scalar_select %p613, %s21, 1
      %p615 = scmp.lt.s32.totalorder %s22, 0
      %s616 = scalar_select %p615, %s22, 0
      %s617 = smul.addr %s614, 2
      %s618 = sadd.s32 %s616, %s617
      %s619 = smul.addr %s618, 8
      %s620 = scalar_lea.vmem %s6, %s619
      // Predicated region
      $region45: #{tpu_custom_call.1} parent=43 // pred_check
        %p621 = pneg %p194
      $region46: #{tpu_custom_call.1} parent=43 // pred_check_branch
        %623 = sbr.rel (%p621) target = $region48
      $region47: #{tpu_custom_call.1} parent=43 // pred_region
        _
      $region48: #{tpu_custom_call.1} parent=43 // pred_fallthru
        _
    $region44: #{tpu_custom_call.1} parent=5 // pred_fallthru
      _
    %p624 = scmp.le.s32.totalorder 2, %s12
    // Predicated region
    $region49: #{tpu_custom_call.1} parent=5 // pred_check
      %p625 = pneg %p624
    $region50: #{tpu_custom_call.1} parent=5 // pred_check_branch
      %627 = sbr.rel (%p625) target = $region52
    $region51: #{tpu_custom_call.1} parent=5 // pred_region
      %s628 = ssub.s32 %s12, 2
      // Predicated region
      $region53: #{tpu_custom_call.1} parent=51 // pred_check
        %p629 = pneg %p200
      $region54: #{tpu_custom_call.1} parent=51 // pred_check_branch
        %631 = sbr.rel (%p629) target = $region56
      $region55: #{tpu_custom_call.1} parent=51 // pred_region
        %p632 = scmp.lt.s32.totalorder %s23, 1
        %s633 = scalar_select %p632, %s23, 1
        %p634 = scmp.lt.s32.totalorder %s24, 0
        %s635 = scalar_select %p634, %s24, 0
        %s636 = smul.addr %s633, 2
        %s637 = sadd.s32 %s635, %s636
        %s638 = smul.addr %s637, 8
        %s639 = scalar_lea.vmem %s6, %s638
      $region56: #{tpu_custom_call.1} parent=51 // pred_fallthru
        _
    $region52: #{tpu_custom_call.1} parent=5 // pred_fallthru
      _
  $region6: #{tpu_custom_call.1} parent=0 // loop_footer
    %s16 = sadd.s32 1, %s12
  $region7: #{tpu_custom_call.1} parent=0 // loop_footer_branch
    %11 = sbr.rel target = $region3
  $region8: #{tpu_custom_call.1} parent=0 // loop_exit
    _

</llo_original>
